<compile_context>
chip_gen: v7x
topology: tpu7x:2x2x1
jax: 0.10.0
libtpu: 0.0.40
codegen_flags: <defaults>
</compile_context>

<pallas_src>
import functools

import jax
import jax.numpy as jnp
from jax.experimental import pallas as pl
from jax.experimental.pallas import tpu as pltpu


def _distance_kernel(s1_ref, s2_ref, y_ref, mask_ref,
                     w1_ref, b1_ref, w2_ref, scal_ref,
                     partial_ref):
    # s1/s2: (TB, H) in the matmul dtype (f32 or bf16).
    s1 = s1_ref[...]
    s2 = s2_ref[...]
    diff = jnp.abs(s1 - s2)

    # concat-equivalent split matmul against the three (H, H) chunks of W1.
    h = (jnp.dot(s1,   w1_ref[0], preferred_element_type=jnp.float32)
         + jnp.dot(s2,   w1_ref[1], preferred_element_type=jnp.float32)
         + jnp.dot(diff, w1_ref[2], preferred_element_type=jnp.float32))
    h = jnp.maximum(h + b1_ref[...], 0.0)                    # (TB, H) f32, relu

    # second linear (H -> 1) as VPU multiply + cross-lane reduction.
    out = jnp.sum(h * w2_ref[...], axis=-1, keepdims=True)   # (TB, 1) f32
    out = out + scal_ref[0]                                  # + b2
    out = out * scal_ref[1] + scal_ref[2]                    # * std + mean

    err = (out - y_ref[...]) * mask_ref[...]                 # mask pad rows
    partial_ref[0, 0] = jnp.sum(err * err)                   # SMEM scalar store


def distance_loss(sentence1, sentence2, labels, mean_dis, std_dis,
                  w1, b1, w2, b2, *, block_b=256, mxu_dtype=None):
    """Pallas equivalent of Distance.forward.

    sentence1, sentence2: (B, H)
    labels:               (B,)
    mean_dis, std_dis:    scalars
    w1: (3H, H), b1: (H,), w2: (H, 1), b2: (1,)   (weights already transposed,
                                                   i.e. the kernel does x @ W)
    block_b:   batch tile size (rounded to a multiple of 8).
    mxu_dtype: dtype for the MXU operands (s1/s2/diff/w1).  Use jnp.bfloat16
               on v6e/v7x to halve weight/activation HBM traffic; keep the
               default (input dtype, typically f32) on v5e.
    Returns scalar float32 loss = sum((out - labels)^2) / B.
    """
    B, H = sentence1.shape
    assert w1.shape == (3 * H, H) and w2.shape == (H, 1)

    if mxu_dtype is None:
        mxu_dtype = sentence1.dtype

    # ---- batch tiling (multiple of 8 sublanes), pad + mask the remainder ----
    tb = max(8, min((int(block_b) // 8) * 8, pl.cdiv(B, 8) * 8))
    b_pad = pl.cdiv(B, tb) * tb
    num_tiles = b_pad // tb
    pad = b_pad - B

    s1 = sentence1.astype(mxu_dtype)
    s2 = sentence2.astype(mxu_dtype)
    labels_2d = labels.reshape(B, 1).astype(jnp.float32)
    mask = jnp.ones((B, 1), jnp.float32)
    if pad:
        s1 = jnp.pad(s1, ((0, pad), (0, 0)))
        s2 = jnp.pad(s2, ((0, pad), (0, 0)))
        labels_2d = jnp.pad(labels_2d, ((0, pad), (0, 0)))
        mask = jnp.pad(mask, ((0, pad), (0, 0)))

    # ---- resident parameters ----
    w1_3 = w1.reshape(3, H, H).astype(mxu_dtype)          # three (H, H) chunks
    b1_2d = b1.reshape(1, H).astype(jnp.float32)
    w2_row = w2.reshape(1, H).astype(jnp.float32)
    scalars = jnp.stack([jnp.asarray(b2, jnp.float32).reshape(()),
                         jnp.asarray(std_dis, jnp.float32).reshape(()),
                         jnp.asarray(mean_dis, jnp.float32).reshape(())])

    smem = pltpu.MemorySpace.SMEM

    partials = pl.pallas_call(
        _distance_kernel,
        out_shape=jax.ShapeDtypeStruct((num_tiles, 1), jnp.float32),
        grid=(num_tiles,),
        in_specs=[
            pl.BlockSpec((tb, H), lambda i: (i, 0)),          # sentence1 tile
            pl.BlockSpec((tb, H), lambda i: (i, 0)),          # sentence2 tile
            pl.BlockSpec((tb, 1), lambda i: (i, 0)),          # labels tile
            pl.BlockSpec((tb, 1), lambda i: (i, 0)),          # valid-row mask
            pl.BlockSpec((3, H, H), lambda i: (0, 0, 0)),     # W1 (resident)
            pl.BlockSpec((1, H), lambda i: (0, 0)),           # b1 (resident)
            pl.BlockSpec((1, H), lambda i: (0, 0)),           # W2 row (resident)
            pl.BlockSpec(memory_space=smem),                  # [b2, std, mean]
        ],
        out_specs=pl.BlockSpec((1, 1), lambda i: (i, 0), memory_space=smem),
        compiler_params=pltpu.CompilerParams(
            dimension_semantics=("parallel",),
            vmem_limit_bytes=32 * 1024 * 1024),
    )(s1, s2, labels_2d, mask, w1_3, b1_2d, w2_row, scalars)

    # Tiny finalize in XLA: sum the per-tile partials and divide by B once.
    return jnp.sum(partials) / jnp.float32(B)


def _reference(sentence1, sentence2, labels, mean_dis, std_dis, w1, b1, w2, b2):
    sentence = jnp.concatenate(
        [sentence1, sentence2, jnp.abs(sentence1 - sentence2)], axis=1)
    h = jax.nn.relu(sentence @ w1 + b1)
    out = (h @ w2 + b2).squeeze(1)
    out = out * std_dis + mean_dis
    return jnp.sum((out - labels) ** 2) / sentence1.shape[0]


if __name__ == "__main__":
    B, H = 8, 32
    key = jax.random.PRNGKey(0)
    k1, k2, k3, k4, k5, k6, k7 = jax.random.split(key, 7)

    sentence1 = jax.random.normal(k1, (B, H), jnp.float32)
    sentence2 = jax.random.normal(k2, (B, H), jnp.float32)
    labels = jax.random.normal(k3, (B,), jnp.float32) * 2.0 + 5.0
    mean_dis, std_dis = 5.0, 2.0

    bound1 = 1.0 / jnp.sqrt(3.0 * H)
    bound2 = 1.0 / jnp.sqrt(float(H))
    w1 = jax.random.uniform(k4, (3 * H, H), jnp.float32, -bound1, bound1)
    b1 = jax.random.uniform(k5, (H,), jnp.float32, -bound1, bound1)
    w2 = jax.random.uniform(k6, (H, 1), jnp.float32, -bound2, bound2)
    b2 = jax.random.uniform(k7, (1,), jnp.float32, -bound2, bound2)

    ref = _reference(sentence1, sentence2, labels, mean_dis, std_dis,
                     w1, b1, w2, b2)

    # f32 path (v5e-friendly), single tile.
    loss = distance_loss(sentence1, sentence2, labels, mean_dis, std_dis,
                         w1, b1, w2, b2)
    jax.block_until_ready(loss)
    assert jnp.allclose(loss, ref, rtol=1e-5, atol=1e-5), (loss, ref)

    # bf16 MXU-operand path (recommended on v6e/v7x); looser tolerance.
    loss_bf16 = distance_loss(sentence1, sentence2, labels, mean_dis, std_dis,
                              w1, b1, w2, b2, mxu_dtype=jnp.bfloat16)
    jax.block_until_ready(loss_bf16)
    assert jnp.allclose(loss_bf16, ref, rtol=2e-2, atol=1e-1), (loss_bf16, ref)

    # Multi-tile grid + padded/masked batch (B not a multiple of the tile).
    B2 = 12
    kk1, kk2, kk3 = jax.random.split(jax.random.PRNGKey(1), 3)
    s1b = jax.random.normal(kk1, (B2, H), jnp.float32)
    s2b = jax.random.normal(kk2, (B2, H), jnp.float32)
    lab_b = jax.random.normal(kk3, (B2,), jnp.float32) * 2.0 + 5.0
    ref2 = _reference(s1b, s2b, lab_b, mean_dis, std_dis, w1, b1, w2, b2)
    loss2 = distance_loss(s1b, s2b, lab_b, mean_dis, std_dis,
                          w1, b1, w2, b2, block_b=8)   # -> 2 grid steps + pad
    jax.block_until_ready(loss2)
    assert jnp.allclose(loss2, ref2, rtol=1e-5, atol=1e-5), (loss2, ref2)

    print("KERNEL_OK")
</pallas_src>

<mosaic_0001>
module attributes {stable_mosaic.version = 11 : i64} {
  func.func @_distance_kernel(%arg0: i32, %arg1: memref<8x32xf32, #tpu.memory_space<vmem>>, %arg2: memref<8x32xf32, #tpu.memory_space<vmem>>, %arg3: memref<8x1xf32, #tpu.memory_space<vmem>>, %arg4: memref<8x1xf32, #tpu.memory_space<vmem>>, %arg5: memref<3x32x32xf32, #tpu.memory_space<vmem>>, %arg6: memref<1x32xf32, #tpu.memory_space<vmem>>, %arg7: memref<1x32xf32, #tpu.memory_space<vmem>>, %arg8: memref<3xf32, #tpu.memory_space<smem>>, %arg9: memref<1x1xf32, #tpu.memory_space<smem>>) attributes {dimension_semantics = [#tpu.dimension_semantics<parallel>], iteration_bounds = array<i64: 1>, scalar_prefetch = 0 : i64, scratch_operands = 0 : i64, tpu.core_type = #tpu.core_type<tc>, window_params = [{transform_indices = @transform_0, window_bounds = array<i64: 8, 32>}, {transform_indices = @transform_1, window_bounds = array<i64: 8, 32>}, {transform_indices = @transform_2, window_bounds = array<i64: 8, 1>}, {transform_indices = @transform_3, window_bounds = array<i64: 8, 1>}, {pipeline_mode = #tpu.pipeline_mode<synchronous>, transform_indices = @transform_4, window_bounds = array<i64: 3, 32, 32>}, {pipeline_mode = #tpu.pipeline_mode<synchronous>, transform_indices = @transform_5, window_bounds = array<i64: 1, 32>}, {pipeline_mode = #tpu.pipeline_mode<synchronous>, transform_indices = @transform_6, window_bounds = array<i64: 1, 32>}, {transform_indices = @transform_7, window_bounds = array<i64: 3>}, {transform_indices = @transform_8, window_bounds = array<i64: 1, 1>}]} {
    %c0 = arith.constant 0 : index
    %c0_0 = arith.constant 0 : index
    %0 = vector.load %arg1[%c0, %c0_0] : memref<8x32xf32, #tpu.memory_space<vmem>>, vector<8x32xf32>
    %c0_1 = arith.constant 0 : index
    %c0_2 = arith.constant 0 : index
    %1 = vector.load %arg2[%c0_1, %c0_2] : memref<8x32xf32, #tpu.memory_space<vmem>>, vector<8x32xf32>
    %2 = arith.subf %0, %1 : vector<8x32xf32>
    %3 = math.absf %2 : vector<8x32xf32>
    %c0_3 = arith.constant 0 : index
    %c0_4 = arith.constant 0 : index
    %c0_5 = arith.constant 0 : index
    %4 = vector.load %arg5[%c0_3, %c0_4, %c0_5] : memref<3x32x32xf32, #tpu.memory_space<vmem>>, vector<1x32x32xf32>
    %5 = vector.shape_cast %4 : vector<1x32x32xf32> to vector<32x32xf32>
    %cst = arith.constant dense<0.000000e+00> : vector<8x32xf32>
    %6 = tpu.matmul %0, %5, %cst {dimension_numbers = #tpu.dot_dimension_numbers<[1], [0], [0], [1], [0, 0, 1, 1], [], []>} : vector<8x32xf32>, vector<32x32xf32>, vector<8x32xf32> -> vector<8x32xf32>
    %c1 = arith.constant 1 : index
    %c0_6 = arith.constant 0 : index
    %c0_7 = arith.constant 0 : index
    %7 = vector.load %arg5[%c1, %c0_6, %c0_7] : memref<3x32x32xf32, #tpu.memory_space<vmem>>, vector<1x32x32xf32>
    %8 = vector.shape_cast %7 : vector<1x32x32xf32> to vector<32x32xf32>
    %cst_8 = arith.constant dense<0.000000e+00> : vector<8x32xf32>
    %9 = tpu.matmul %1, %8, %cst_8 {dimension_numbers = #tpu.dot_dimension_numbers<[1], [0], [0], [1], [0, 0, 1, 1], [], []>} : vector<8x32xf32>, vector<32x32xf32>, vector<8x32xf32> -> vector<8x32xf32>
    %10 = arith.addf %6, %9 : vector<8x32xf32>
    %c2 = arith.constant 2 : index
    %c0_9 = arith.constant 0 : index
    %c0_10 = arith.constant 0 : index
    %11 = vector.load %arg5[%c2, %c0_9, %c0_10] : memref<3x32x32xf32, #tpu.memory_space<vmem>>, vector<1x32x32xf32>
    %12 = vector.shape_cast %11 : vector<1x32x32xf32> to vector<32x32xf32>
    %cst_11 = arith.constant dense<0.000000e+00> : vector<8x32xf32>
    %13 = tpu.matmul %3, %12, %cst_11 {dimension_numbers = #tpu.dot_dimension_numbers<[1], [0], [0], [1], [0, 0, 1, 1], [], []>} : vector<8x32xf32>, vector<32x32xf32>, vector<8x32xf32> -> vector<8x32xf32>
    %14 = arith.addf %10, %13 : vector<8x32xf32>
    %c0_12 = arith.constant 0 : index
    %c0_13 = arith.constant 0 : index
    %15 = vector.load %arg6[%c0_12, %c0_13] : memref<1x32xf32, #tpu.memory_space<vmem>>, vector<1x32xf32>
    %16 = vector.broadcast %15 : vector<1x32xf32> to vector<8x32xf32>
    %17 = arith.addf %14, %16 : vector<8x32xf32>
    %cst_14 = arith.constant 0.000000e+00 : f32
    %18 = vector.broadcast %cst_14 : f32 to vector<8x32xf32>
    %19 = arith.maximumf %17, %18 : vector<8x32xf32>
    %c0_15 = arith.constant 0 : index
    %c0_16 = arith.constant 0 : index
    %20 = vector.load %arg7[%c0_15, %c0_16] : memref<1x32xf32, #tpu.memory_space<vmem>>, vector<1x32xf32>
    %21 = vector.broadcast %20 : vector<1x32xf32> to vector<8x32xf32>
    %22 = arith.mulf %19, %21 : vector<8x32xf32>
    %cst_17 = arith.constant dense<0.000000e+00> : vector<8xf32>
    %23 = vector.multi_reduction <add>, %22, %cst_17 [1] : vector<8x32xf32> to vector<8xf32>
    %24 = vector.shape_cast %23 : vector<8xf32> to vector<8x1xf32>
    %c0_18 = arith.constant 0 : index
    %25 = memref.load %arg8[%c0_18] : memref<3xf32, #tpu.memory_space<smem>>
    %26 = vector.broadcast %25 : f32 to vector<8x1xf32>
    %27 = arith.addf %24, %26 : vector<8x1xf32>
    %c1_19 = arith.constant 1 : index
    %28 = memref.load %arg8[%c1_19] : memref<3xf32, #tpu.memory_space<smem>>
    %29 = vector.broadcast %28 : f32 to vector<8x1xf32>
    %30 = arith.mulf %27, %29 : vector<8x1xf32>
    %c2_20 = arith.constant 2 : index
    %31 = memref.load %arg8[%c2_20] : memref<3xf32, #tpu.memory_space<smem>>
    %32 = vector.broadcast %31 : f32 to vector<8x1xf32>
    %33 = arith.addf %30, %32 : vector<8x1xf32>
    %c0_21 = arith.constant 0 : index
    %c0_22 = arith.constant 0 : index
    %34 = vector.load %arg3[%c0_21, %c0_22] : memref<8x1xf32, #tpu.memory_space<vmem>>, vector<8x1xf32>
    %35 = arith.subf %33, %34 : vector<8x1xf32>
    %c0_23 = arith.constant 0 : index
    %c0_24 = arith.constant 0 : index
    %36 = vector.load %arg4[%c0_23, %c0_24] : memref<8x1xf32, #tpu.memory_space<vmem>>, vector<8x1xf32>
    %37 = arith.mulf %35, %36 : vector<8x1xf32>
    %38 = arith.mulf %37, %37 : vector<8x1xf32>
    %39 = vector.shape_cast %38 : vector<8x1xf32> to vector<1x8x1xf32>
    %cst_25 = arith.constant dense<0.000000e+00> : vector<1xf32>
    %40 = vector.multi_reduction <add>, %39, %cst_25 [1, 2] : vector<1x8x1xf32> to vector<1xf32>
    %41 = vector.shape_cast %40 : vector<1xf32> to vector<1x1x1xf32>
    %42 = vector.extract %41[0, 0, 0] : f32 from vector<1x1x1xf32>
    %c0_26 = arith.constant 0 : index
    %c0_27 = arith.constant 0 : index
    %43 = memref.load %arg9[%c0_26, %c0_27] : memref<1x1xf32, #tpu.memory_space<smem>>
    memref.store %42, %arg9[%c0_26, %c0_27] : memref<1x1xf32, #tpu.memory_space<smem>>
    return
  }
  func.func @transform_0(%arg0: i32) -> (i32, i32) {
    %c0_i32 = arith.constant 0 : i32
    %c0_i32_0 = arith.constant 0 : i32
    return %arg0, %c0_i32 : i32, i32
  }
  func.func @transform_1(%arg0: i32) -> (i32, i32) {
    %c0_i32 = arith.constant 0 : i32
    %c0_i32_0 = arith.constant 0 : i32
    return %arg0, %c0_i32 : i32, i32
  }
  func.func @transform_2(%arg0: i32) -> (i32, i32) {
    %c0_i32 = arith.constant 0 : i32
    %c0_i32_0 = arith.constant 0 : i32
    return %arg0, %c0_i32 : i32, i32
  }
  func.func @transform_3(%arg0: i32) -> (i32, i32) {
    %c0_i32 = arith.constant 0 : i32
    %c0_i32_0 = arith.constant 0 : i32
    return %arg0, %c0_i32 : i32, i32
  }
  func.func @transform_4(%arg0: i32) -> (i32, i32, i32) {
    %c0_i32 = arith.constant 0 : i32
    %c0_i32_0 = arith.constant 0 : i32
    %c0_i32_1 = arith.constant 0 : i32
    %c0_i32_2 = arith.constant 0 : i32
    return %c0_i32, %c0_i32_0, %c0_i32_1 : i32, i32, i32
  }
  func.func @transform_5(%arg0: i32) -> (i32, i32) {
    %c0_i32 = arith.constant 0 : i32
    %c0_i32_0 = arith.constant 0 : i32
    %c0_i32_1 = arith.constant 0 : i32
    return %c0_i32, %c0_i32_0 : i32, i32
  }
  func.func @transform_6(%arg0: i32) -> (i32, i32) {
    %c0_i32 = arith.constant 0 : i32
    %c0_i32_0 = arith.constant 0 : i32
    %c0_i32_1 = arith.constant 0 : i32
    return %c0_i32, %c0_i32_0 : i32, i32
  }
  func.func @transform_7(%arg0: i32) -> i32 {
    %c0_i32 = arith.constant 0 : i32
    %c0_i32_0 = arith.constant 0 : i32
    return %c0_i32 : i32
  }
  func.func @transform_8(%arg0: i32) -> (i32, i32) {
    %c0_i32 = arith.constant 0 : i32
    %c0_i32_0 = arith.constant 0 : i32
    return %arg0, %c0_i32 : i32, i32
  }
}

</mosaic_0001>

<llo_original>
// kernel: tpu_custom_call.1
$region0: #{tpu_custom_call.1}
  #allocation0 [shape = 'u32[]', space=smem, size = 0x4, offset = 0x4, fixed_abs, tag = 'smem constant byte address 0x4 - core index']
  #allocation1 [shape = 'u32[144,128]{1,0:T(1,128)}', space=vmem, size = 0x12000, scoped, tag = 'internal scratch']
  %s0 = inlined_call_operand.vmem [shape: f32[8,32], index: 0, kind: input, shape index: {}]
  %s1 = inlined_call_operand.vmem [shape: f32[8,32], index: 1, kind: input, shape index: {}]
  %s2 = inlined_call_operand.vmem [shape: f32[8,1], index: 2, kind: input, shape index: {}]
  %s3 = inlined_call_operand.vmem [shape: f32[8,1], index: 3, kind: input, shape index: {}]
  %s4 = inlined_call_operand.hbm [shape: f32[3,32,32], index: 4, kind: input, shape index: {}]
  %s5 = inlined_call_operand.vmem [shape: f32[1,32], index: 5, kind: input, shape index: {}]
  %s6 = inlined_call_operand.vmem [shape: f32[1,32], index: 6, kind: input, shape index: {}]
  %s7 = inlined_call_operand.vmem [shape: f32[3], index: 7, kind: input, shape index: {}]
  %s8 = inlined_call_operand.hbm [shape: f32[1,1], index: 8, kind: output, shape index: {}]
  %s9 = sld [smem:[#allocation0]]
  $region50: #{tpu_custom_call.1} parent=0
    _
  %s11 = ssub.s32 1, %s9
  %s12 = scalar_select 0, %s11, %s9
  $region1: #{tpu_custom_call.1} parent=0
    #allocation2 [shape = 'u8[49152]{0}', space=vmem, size = 0xc000, scoped, tag = 'input window, operand 4, single buffered']
    #allocation3 [shape = 's32[1]{0}', space=sflag, size = 0x4, scoped, tag = 'scoped memory for tpu_custom_call.1']
    #allocation4 [shape = 's32[1]{0}', space=sflag, size = 0x4, scoped, tag = 'scoped memory for tpu_custom_call.1']
    #allocation5 [shape = 's32[1]{0}', space=sflag, size = 0x4, scoped, tag = 'scoped memory for tpu_custom_call.1']
    #allocation6 [shape = 'u8[512]{0}', space=smem, size = 0x200, scoped, tag = 'input window, operand 7, single buffered']
    #allocation7 [shape = 'u8[512]{0}', space=smem, size = 0x200, scoped, tag = 'output window, operand 0, single buffered']
    %13 = vsyncpa [#allocation3], 0
    %14 = vsyncpa [#allocation5], 0
    %15 = vsyncpa [#allocation4], 0
    // Predicated region
    $region2: #{tpu_custom_call.1} parent=1 // pred_check
      _
    $region3: #{tpu_custom_call.1} parent=1 // pred_check_branch
      %17 = sbr.rel (0) target = $region5
    $region4: #{tpu_custom_call.1} parent=1 // pred_region
      _
    $region5: #{tpu_custom_call.1} parent=1 // pred_fallthru
      _
    // Predicated region
    $region6: #{tpu_custom_call.1} parent=1 // pred_check
      _
    $region7: #{tpu_custom_call.1} parent=1 // pred_check_branch
      %19 = sbr.rel (0) target = $region9
    $region8: #{tpu_custom_call.1} parent=1 // pred_region
      _
    $region9: #{tpu_custom_call.1} parent=1 // pred_fallthru
      _
    // Predicated region
    $region10: #{tpu_custom_call.1} parent=1 // pred_check
      _
    $region11: #{tpu_custom_call.1} parent=1 // pred_check_branch
      %21 = sbr.rel (0) target = $region13
    $region12: #{tpu_custom_call.1} parent=1 // pred_region
      _
    $region13: #{tpu_custom_call.1} parent=1 // pred_fallthru
      _
    // Predicated region
    $region14: #{tpu_custom_call.1} parent=1 // pred_check
      _
    $region15: #{tpu_custom_call.1} parent=1 // pred_check_branch
      %23 = sbr.rel (0) target = $region17
    $region16: #{tpu_custom_call.1} parent=1 // pred_region
      _
    $region17: #{tpu_custom_call.1} parent=1 // pred_fallthru
      _
    // Predicated region
    $region18: #{tpu_custom_call.1} parent=1 // pred_check
      _
    $region19: #{tpu_custom_call.1} parent=1 // pred_check_branch
      %25 = sbr.rel (0) target = $region21
    $region20: #{tpu_custom_call.1} parent=1 // pred_region
      %s27 = ssub.s32 1536, 1536
      %28 = vsyncadd [#allocation3], %s27
      %s29 = sshll.u32 [#allocation2], 4
      %s30 = int_to_ptr.vmem [resolvable:$true] %s29
      %35 = dma.hbm_to_vmem [thread:$0]  %s4, 1536, %s30, [#allocation3], 128, 128, 8
    $region21: #{tpu_custom_call.1} parent=1 // pred_fallthru
      _
    // Predicated region
    $region22: #{tpu_custom_call.1} parent=1 // pred_check
      _
    $region23: #{tpu_custom_call.1} parent=1 // pred_check_branch
      %37 = sbr.rel (0) target = $region25
    $region24: #{tpu_custom_call.1} parent=1 // pred_region
      _
    $region25: #{tpu_custom_call.1} parent=1 // pred_fallthru
      _
    // Predicated region
    $region26: #{tpu_custom_call.1} parent=1 // pred_check
      _
    $region27: #{tpu_custom_call.1} parent=1 // pred_check_branch
      %39 = sbr.rel (0) target = $region29
    $region28: #{tpu_custom_call.1} parent=1 // pred_region
      _
    $region29: #{tpu_custom_call.1} parent=1 // pred_fallthru
      _
    // Predicated region
    $region30: #{tpu_custom_call.1} parent=1 // pred_check
      _
    $region31: #{tpu_custom_call.1} parent=1 // pred_check_branch
      %41 = sbr.rel (0) target = $region33
    $region32: #{tpu_custom_call.1} parent=1 // pred_region
      %s43 = ssub.s32 16, 16
      %44 = vsyncadd [#allocation5], %s43
      %s46 = sshll.u32 %s7, 4
      %s47 = int_to_ptr.vmem [resolvable:$true] %s46
      %49 = dma.vmem_to_smem %s47, 16, [#allocation6], [#allocation5]
    $region33: #{tpu_custom_call.1} parent=1 // pred_fallthru
      _
    // Predicated region
    $region34: #{tpu_custom_call.1} parent=1 // pred_check
      _
    $region35: #{tpu_custom_call.1} parent=1 // pred_check_branch
      %51 = sbr.rel (0) target = $region37
    $region36: #{tpu_custom_call.1} parent=1 // pred_region
      %52 = dma.done [#allocation3], 1536
    $region37: #{tpu_custom_call.1} parent=1 // pred_fallthru
      _
    // Predicated region
    $region38: #{tpu_custom_call.1} parent=1 // pred_check
      _
    $region39: #{tpu_custom_call.1} parent=1 // pred_check_branch
      %54 = sbr.rel (0) target = $region41
    $region40: #{tpu_custom_call.1} parent=1 // pred_region
      %55 = dma.done [#allocation5], 16
    $region41: #{tpu_custom_call.1} parent=1 // pred_fallthru
      _
    %56 = sfence
    %v57 = vld [vmem:[%s0] sm:$0xff]
    %v58 = vld [vmem:[%s1] sm:$0xff]
    %v59 = vsub.f32 %v57, %v58
    %v60 = vand.u32 2147483647, %v59
    %v61 = vld [vmem:[#allocation2] sm:$0xff]
    %v62 = vld [vmem:[#allocation2 + $0x8] sm:$0xff]
    %v63 = vld [vmem:[#allocation2 + $0x10] sm:$0xff]
    %v64 = vld [vmem:[#allocation2 + $0x18] sm:$0xff]
    %s65 = scalar_lea.vmem [#allocation2], 32
    %v66 = vld [vmem:[%s65] sm:$0xff]
    %v67 = vld [vmem:[%s65 + $0x8] sm:$0xff]
    %v68 = vld [vmem:[%s65 + $0x10] sm:$0xff]
    %v69 = vld [vmem:[%s65 + $0x18] sm:$0xff]
    %vm70 = vcmask 261120
    %v72 = vsel %vm70, %v58, 0
    %74 = vmatprep.subr.mxu0 0.0
    %75 = vmatpush1.msra.mxu0 %v66
    %76 = vmatprep.subr.mxu0 0.0
    %77 = vmatpush1.msra.mxu0 %v67
    %78 = vmatprep.subr.mxu0 0.0
    %79 = vmatpush1.msra.mxu0 %v68
    %80 = vmatprep.subr.mxu0 0.0
    %81 = vmatpush1.msra.mxu0 %v69
    %82 = vmatprep.subr.mxu0 0.0
    %83 = vmatpush1.msra.mxu0 0.0
    %84 = vmatprep.subr.mxu0 0.0
    %85 = vmatpush1.msra.mxu0 0.0
    %86 = vmatprep.subr.mxu0 0.0
    %87 = vmatpush1.msra.mxu0 0.0
    %88 = vmatprep.subr.mxu0 0.0
    %89 = vmatpush1.msra.mxu0 0.0
    %90 = vmatprep.subr.mxu0 0.0
    %91 = vmatpush1.msra.mxu0 0.0
    %92 = vmatprep.subr.mxu0 0.0
    %93 = vmatpush1.msra.mxu0 0.0
    %94 = vmatprep.subr.mxu0 0.0
    %95 = vmatpush1.msra.mxu0 0.0
    %96 = vmatprep.subr.mxu0 0.0
    %97 = vmatpush1.msra.mxu0 0.0
    %98 = vmatprep.subr.mxu0 0.0
    %99 = vmatpush1.msra.mxu0 0.0
    %100 = vmatprep.subr.mxu0 0.0
    %101 = vmatpush1.msra.mxu0 0.0
    %102 = vmatprep.subr.mxu0 0.0
    %103 = vmatpush1.msra.mxu0 0.0
    %104 = vmatprep.subr.mxu0 0.0
    %105 = vmatpush1.msra.mxu0 0.0
    %106 = vmatprep.subr.mxu0 0.0
    %107 = vmatpush1.msra.mxu0 0.0
    %108 = vmatprep.subr.mxu0 0.0
    %109 = vmatpush1.msra.mxu0 0.0
    %110 = vmatprep.subr.mxu0 0.0
    %111 = vmatpush1.msra.mxu0 0.0
    %112 = vmatprep.subr.mxu0 0.0
    %113 = vmatpush1.msra.mxu0 0.0
    %114 = vmatprep.subr.mxu0 0.0
    %115 = vmatpush1.msra.mxu0 0.0
    %116 = vmatprep.subr.mxu0 0.0
    %117 = vmatpush1.msra.mxu0 0.0
    %118 = vmatprep.subr.mxu0 0.0
    %119 = vmatpush1.msra.mxu0 0.0
    %120 = vmatprep.subr.mxu0 0.0
    %121 = vmatpush1.msra.mxu0 0.0
    %122 = vmatprep.subr.mxu0 0.0
    %123 = vmatpush1.msra.mxu0 0.0
    %124 = vmatprep.subr.mxu0 0.0
    %125 = vmatpush1.msra.mxu0 0.0
    %126 = vmatprep.subr.mxu0 0.0
    %127 = vmatpush1.msra.mxu0 0.0
    %128 = vmatprep.subr.mxu0 0.0
    %129 = vmatpush1.msra.mxu0 0.0
    %130 = vmatprep.subr.mxu0 0.0
    %131 = vmatpush1.msra.mxu0 0.0
    %132 = vmatprep.subr.mxu0 0.0
    %133 = vmatpush1.msra.mxu0 0.0
    %134 = vmatprep.subr.mxu0 0.0
    %135 = vmatpush1.msra.mxu0 0.0
    %136 = vmatprep.subr.mxu0 0.0
    %137 = vmatpush1.msra.mxu0 0.0
    %138 = vmatprep.mubr.f32.mxu0 0.0
    %139 = vmatmul.mubr.f32.gmra.mrb[0].mxu0 %v72
    %v140 = vpop.f32.mrb[0].mxu0
    %v141 = vadd.f32 0.0, %v140
    %v142 = vpop.f32.mrb[0].mxu0
    %143 = vdwg.mxu0
    %v145 = vsel %vm70, %v57, 0
    %147 = vmatprep.subr.mxu0 0.0
    %148 = vmatpush1.msra.mxu0 %v61
    %149 = vmatprep.subr.mxu0 0.0
    %150 = vmatpush1.msra.mxu0 %v62
    %151 = vmatprep.subr.mxu0 0.0
    %152 = vmatpush1.msra.mxu0 %v63
    %153 = vmatprep.subr.mxu0 0.0
    %154 = vmatpush1.msra.mxu0 %v64
    %155 = vmatprep.subr.mxu0 0.0
    %156 = vmatpush1.msra.mxu0 0.0
    %157 = vmatprep.subr.mxu0 0.0
    %158 = vmatpush1.msra.mxu0 0.0
    %159 = vmatprep.subr.mxu0 0.0
    %160 = vmatpush1.msra.mxu0 0.0
    %161 = vmatprep.subr.mxu0 0.0
    %162 = vmatpush1.msra.mxu0 0.0
    %163 = vmatprep.subr.mxu0 0.0
    %164 = vmatpush1.msra.mxu0 0.0
    %165 = vmatprep.subr.mxu0 0.0
    %166 = vmatpush1.msra.mxu0 0.0
    %167 = vmatprep.subr.mxu0 0.0
    %168 = vmatpush1.msra.mxu0 0.0
    %169 = vmatprep.subr.mxu0 0.0
    %170 = vmatpush1.msra.mxu0 0.0
    %171 = vmatprep.subr.mxu0 0.0
    %172 = vmatpush1.msra.mxu0 0.0
    %173 = vmatprep.subr.mxu0 0.0
    %174 = vmatpush1.msra.mxu0 0.0
    %175 = vmatprep.subr.mxu0 0.0
    %176 = vmatpush1.msra.mxu0 0.0
    %177 = vmatprep.subr.mxu0 0.0
    %178 = vmatpush1.msra.mxu0 0.0
    %179 = vmatprep.subr.mxu0 0.0
    %180 = vmatpush1.msra.mxu0 0.0
    %181 = vmatprep.subr.mxu0 0.0
    %182 = vmatpush1.msra.mxu0 0.0
    %183 = vmatprep.subr.mxu0 0.0
    %184 = vmatpush1.msra.mxu0 0.0
    %185 = vmatprep.subr.mxu0 0.0
    %186 = vmatpush1.msra.mxu0 0.0
    %187 = vmatprep.subr.mxu0 0.0
    %188 = vmatpush1.msra.mxu0 0.0
    %189 = vmatprep.subr.mxu0 0.0
    %190 = vmatpush1.msra.mxu0 0.0
    %191 = vmatprep.subr.mxu0 0.0
    %192 = vmatpush1.msra.mxu0 0.0
    %193 = vmatprep.subr.mxu0 0.0
    %194 = vmatpush1.msra.mxu0 0.0
    %195 = vmatprep.subr.mxu0 0.0
    %196 = vmatpush1.msra.mxu0 0.0
    %197 = vmatprep.subr.mxu0 0.0
    %198 = vmatpush1.msra.mxu0 0.0
    %199 = vmatprep.subr.mxu0 0.0
    %200 = vmatpush1.msra.mxu0 0.0
    %201 = vmatprep.subr.mxu0 0.0
    %202 = vmatpush1.msra.mxu0 0.0
    %203 = vmatprep.subr.mxu0 0.0
    %204 = vmatpush1.msra.mxu0 0.0
    %205 = vmatprep.subr.mxu0 0.0
    %206 = vmatpush1.msra.mxu0 0.0
    %207 = vmatprep.subr.mxu0 0.0
    %208 = vmatpush1.msra.mxu0 0.0
    %209 = vmatprep.subr.mxu0 0.0
    %210 = vmatpush1.msra.mxu0 0.0
    %211 = vmatprep.mubr.f32.mxu0 0.0
    %212 = vmatmul.mubr.f32.gmra.mrb[0].mxu0 %v145
    %v213 = vpop.f32.mrb[0].mxu0
    %v214 = vadd.f32 %v141, %v213
    %v215 = vpop.f32.mrb[0].mxu0
    %216 = vdwg.mxu0
    %s217 = scalar_lea.vmem [#allocation2], 64
    %v218 = vld [vmem:[%s217] sm:$0xff]
    %v219 = vld [vmem:[%s217 + $0x8] sm:$0xff]
    %v220 = vld [vmem:[%s217 + $0x10] sm:$0xff]
    %v221 = vld [vmem:[%s217 + $0x18] sm:$0xff]
    %v223 = vsel %vm70, %v60, 0
    %225 = vmatprep.subr.mxu0 0.0
    %226 = vmatpush1.msra.mxu0 %v218
    %227 = vmatprep.subr.mxu0 0.0
    %228 = vmatpush1.msra.mxu0 %v219
    %229 = vmatprep.subr.mxu0 0.0
    %230 = vmatpush1.msra.mxu0 %v220
    %231 = vmatprep.subr.mxu0 0.0
    %232 = vmatpush1.msra.mxu0 %v221
    %233 = vmatprep.subr.mxu0 0.0
    %234 = vmatpush1.msra.mxu0 0.0
    %235 = vmatprep.subr.mxu0 0.0
    %236 = vmatpush1.msra.mxu0 0.0
    %237 = vmatprep.subr.mxu0 0.0
    %238 = vmatpush1.msra.mxu0 0.0
    %239 = vmatprep.subr.mxu0 0.0
    %240 = vmatpush1.msra.mxu0 0.0
    %241 = vmatprep.subr.mxu0 0.0
    %242 = vmatpush1.msra.mxu0 0.0
    %243 = vmatprep.subr.mxu0 0.0
    %244 = vmatpush1.msra.mxu0 0.0
    %245 = vmatprep.subr.mxu0 0.0
    %246 = vmatpush1.msra.mxu0 0.0
    %247 = vmatprep.subr.mxu0 0.0
    %248 = vmatpush1.msra.mxu0 0.0
    %249 = vmatprep.subr.mxu0 0.0
    %250 = vmatpush1.msra.mxu0 0.0
    %251 = vmatprep.subr.mxu0 0.0
    %252 = vmatpush1.msra.mxu0 0.0
    %253 = vmatprep.subr.mxu0 0.0
    %254 = vmatpush1.msra.mxu0 0.0
    %255 = vmatprep.subr.mxu0 0.0
    %256 = vmatpush1.msra.mxu0 0.0
    %257 = vmatprep.subr.mxu0 0.0
    %258 = vmatpush1.msra.mxu0 0.0
    %259 = vmatprep.subr.mxu0 0.0
    %260 = vmatpush1.msra.mxu0 0.0
    %261 = vmatprep.subr.mxu0 0.0
    %262 = vmatpush1.msra.mxu0 0.0
    %263 = vmatprep.subr.mxu0 0.0
    %264 = vmatpush1.msra.mxu0 0.0
    %265 = vmatprep.subr.mxu0 0.0
    %266 = vmatpush1.msra.mxu0 0.0
    %267 = vmatprep.subr.mxu0 0.0
    %268 = vmatpush1.msra.mxu0 0.0
    %269 = vmatprep.subr.mxu0 0.0
    %270 = vmatpush1.msra.mxu0 0.0
    %271 = vmatprep.subr.mxu0 0.0
    %272 = vmatpush1.msra.mxu0 0.0
    %273 = vmatprep.subr.mxu0 0.0
    %274 = vmatpush1.msra.mxu0 0.0
    %275 = vmatprep.subr.mxu0 0.0
    %276 = vmatpush1.msra.mxu0 0.0
    %277 = vmatprep.subr.mxu0 0.0
    %278 = vmatpush1.msra.mxu0 0.0
    %279 = vmatprep.subr.mxu0 0.0
    %280 = vmatpush1.msra.mxu0 0.0
    %281 = vmatprep.subr.mxu0 0.0
    %282 = vmatpush1.msra.mxu0 0.0
    %283 = vmatprep.subr.mxu0 0.0
    %284 = vmatpush1.msra.mxu0 0.0
    %285 = vmatprep.subr.mxu0 0.0
    %286 = vmatpush1.msra.mxu0 0.0
    %287 = vmatprep.subr.mxu0 0.0
    %288 = vmatpush1.msra.mxu0 0.0
    %289 = vmatprep.mubr.f32.mxu0 0.0
    %290 = vmatmul.mubr.f32.gmra.mrb[0].mxu0 %v223
    %v291 = vpop.f32.mrb[0].mxu0
    %v292 = vadd.f32 0.0, %v291
    %v293 = vpop.f32.mrb[0].mxu0
    %294 = vdwg.mxu0
    %v295 = vadd.f32 %v214, %v292
    %v296 = vld [vmem:[%s5] sm:$0x1]
    %v298 = vlaneseq
    %v299 = vshrl.u32 %v298, 7
    %v300 = vsub.s32 0, %v299
    %v301 = vrot.slane %v296, %v300
    %v303 = vadd.f32 %v295, %v301
    %v304 = vmax.f32 %v303, 0.0
    %v305 = vld [vmem:[%s6] sm:$0x1]
    %v307 = vlaneseq
    %v308 = vshrl.u32 %v307, 7
    %v309 = vsub.s32 0, %v308
    %v310 = vrot.slane %v305, %v309
    %v312 = vmul.f32 %v304, %v310
    %v313 = vsel %vm70, %v312, 0.0
    %314 = vadd.xlane.f32.xlu0 %v313
    %v315 = vpop.xlane.xlu0 %314
    %s316 = sld [smem:[#allocation6]]
    %v317 = vstv %s316
    %v318 = vadd.f32 %v315, %v317
    %s319 = sld [smem:[#allocation6 + $0x1]]
    %v320 = vstv %s319
    %v321 = vmul.f32 %v318, %v320
    %s322 = sld [smem:[#allocation6 + $0x2]]
    %v323 = vstv %s322
    %v324 = vadd.f32 %v321, %v323
    %v325 = vld [vmem:[%s2] sm:$0xff]
    %v326 = vsub.f32 %v324, %v325
    %v327 = vld [vmem:[%s3] sm:$0xff]
    %v328 = vmul.f32 %v326, %v327
    %v329 = vmul.f32 %v328, %v328
    %vm330 = vcmask 7168
    %v331 = vsel %vm330, %v329, 0.0
    %332 = vadd.xlane.f32.xlu0 %v331
    %v333 = vpop.xlane.xlu0 %332
    %v334 = vrot.slane %v333, 4
    %v335 = vadd.f32 %v333, %v334
    %v336 = vrot.slane %v335, 2
    %v337 = vadd.f32 %v335, %v336
    %v338 = vrot.slane %v337, 1
    %v339 = vadd.f32 %v337, %v338
    %s340 = vtos %v339
    %s341 = scalar_lea.smem [#allocation7], 0
    %342 = sst [smem:[%s341]] %s340
    // Predicated region
    $region42: #{tpu_custom_call.1} parent=1 // pred_check
      _
    $region43: #{tpu_custom_call.1} parent=1 // pred_check_branch
      %344 = sbr.rel (0) target = $region45
    $region44: #{tpu_custom_call.1} parent=1 // pred_region
      %s346 = ssub.s32 16, 16
      %347 = vsyncadd [#allocation4], %s346
      %350 = dma.smem_to_hbm [#allocation7], 16, %s8, [#allocation4]
    $region45: #{tpu_custom_call.1} parent=1 // pred_fallthru
      _
    // Predicated region
    $region46: #{tpu_custom_call.1} parent=1 // pred_check
      _
    $region47: #{tpu_custom_call.1} parent=1 // pred_check_branch
      %352 = sbr.rel (0) target = $region49
    $region48: #{tpu_custom_call.1} parent=1 // pred_region
      %353 = dma.done [#allocation4], 16
    $region49: #{tpu_custom_call.1} parent=1 // pred_fallthru
      _
    %354 = sfence
    %355 = vsyncpa [#allocation3], 1
    %356 = vsyncpa [#allocation4], 1
    %357 = vsyncpa [#allocation5], 1

</llo_original>
